<compile_context>
chip_gen: v5e
topology: v5e:2x2
jax: 0.10.0
libtpu: 0.0.40
codegen_flags: <defaults>
</compile_context>

<pallas_src>
import functools

import jax
import jax.numpy as jnp
from jax.experimental import pallas as pl
from jax.experimental.pallas import tpu as pltpu

EPS = 1e-5


# ----------------------------------------------------------------------------
# Kernel 1: fused [optional BN+ReLU on the input] -> 3x3 "same" conv ->
# per-batch BatchNorm partial statistics.  One grid step = one batch element.
#
# Layout: input / output are (C, H*W) lane-dense (NCHW flattened).  A bf16
# column scratch col[(dx*Cin+ci), yp*W + x] = padded_input[yp, x+dx, ci] is
# built with 3 lane-shifted writes (row-wrap contamination killed by two
# precomputed 0/1 masks).  The conv is then 3 MXU matmuls, one per kernel row:
#   out[co, y*W+x] += W_dy[co, dx*Cin+ci] @ col[dx*Cin+ci, (y+dy)*W + x]
# ----------------------------------------------------------------------------
def conv_col_kernel(x_ref, w_ref, scale_ref, shift_ref, m0_ref, m2_ref,
                    o_ref, psum_ref, psq_ref, col_ref, *, H, W,
                    apply_input_act):
    # x_ref:    (1, Cin, H*W)  f32       w_ref:   (3, Cout, 3*Cin) bf16
    # scale/shift_ref: (Cin, 1) f32      m0/m2_ref: (1, H*W) bf16 masks
    # o_ref:    (1, Cout, H*W) f32       psum/psq_ref: (1, Cout, 1) f32
    # col_ref:  VMEM (3*Cin, (H+2)*W) bf16
    C = x_ref.shape[1]
    HW = H * W

    x = x_ref[0]                                             # (C, HW) f32
    if apply_input_act:
        # Fused BatchNorm(prev conv) + ReLU on the conv input.
        x = jnp.maximum(x * scale_ref[...] + shift_ref[...], 0.0)
    xb = x.astype(jnp.bfloat16)                              # single cast

    # Zero only the two (3C, W+1) border strips; the interior columns are fully
    # overwritten below every step (no full-tile zero fill, megacore-safe).
    zed = jnp.zeros((3 * C, W + 1), jnp.bfloat16)
    col_ref[:, 0:W + 1] = zed
    col_ref[:, (H + 1) * W - 1:(H + 2) * W] = zed

    # dx = 1 (center tap): straight copy shifted by one padded row.
    col_ref[C:2 * C, W:(H + 1) * W] = xb
    # dx = 0 (left neighbour): shift by W+1 lanes; mask kills the value that
    # would wrap around from the previous image row (x == 0 must see zero pad).
    col_ref[0:C, W + 1:(H + 1) * W] = (xb * m0_ref[...])[:, 0:HW - 1]
    # dx = 2 (right neighbour): shift by W-1 lanes; mask kills row wrap-around
    # (x == W-1 must see zero pad).
    col_ref[2 * C:3 * C, W:(H + 1) * W - 1] = (xb * m2_ref[...])[:, 1:HW]

    # 3 matmuls with K = 3*Cin (instead of 9 with K = Cin), accumulated as
    # values -> no accumulator VMEM read-modify-write passes.
    out = None
    for dy in range(3):
        rhs = col_ref[:, dy * W: dy * W + HW]                # (3C, HW) bf16
        p = jnp.dot(w_ref[dy], rhs, preferred_element_type=jnp.float32)
        out = p if out is None else out + p                  # (Cout, HW) f32

    o_ref[0] = out                                           # lane-dense store
    # Per-batch partial BN statistics (reduced over N in the wrapper).
    psum_ref[0] = jnp.sum(out, axis=1, keepdims=True)
    psq_ref[0] = jnp.sum(out * out, axis=1, keepdims=True)


def conv3x3_bn_stats(x_flat, w3, scale_in, shift_in, m_dx0, m_dx2, H, W, *,
                     apply_input_act):
    """3x3 same conv (bias-free) with optional fused input BN+ReLU.

    x_flat: (N, Cin, H*W) f32.  Returns (conv_out (N, Cout, H*W) f32,
    per-batch sum (N, Cout, 1), per-batch sum-of-squares (N, Cout, 1)).
    """
    N, Cin, HW = x_flat.shape
    Cout = w3.shape[1]
    kernel = functools.partial(conv_col_kernel, H=H, W=W,
                               apply_input_act=apply_input_act)
    return pl.pallas_call(
        kernel,
        out_shape=(jax.ShapeDtypeStruct((N, Cout, HW), jnp.float32),
                   jax.ShapeDtypeStruct((N, Cout, 1), jnp.float32),
                   jax.ShapeDtypeStruct((N, Cout, 1), jnp.float32)),
        grid=(N,),
        in_specs=[
            pl.BlockSpec((1, Cin, HW), lambda n: (n, 0, 0)),
            pl.BlockSpec((3, Cout, 3 * Cin), lambda n: (0, 0, 0)),
            pl.BlockSpec((Cin, 1), lambda n: (0, 0)),
            pl.BlockSpec((Cin, 1), lambda n: (0, 0)),
            pl.BlockSpec((1, HW), lambda n: (0, 0)),
            pl.BlockSpec((1, HW), lambda n: (0, 0)),
        ],
        out_specs=(pl.BlockSpec((1, Cout, HW), lambda n: (n, 0, 0)),
                   pl.BlockSpec((1, Cout, 1), lambda n: (n, 0, 0)),
                   pl.BlockSpec((1, Cout, 1), lambda n: (n, 0, 0))),
        scratch_shapes=[pltpu.VMEM((3 * Cin, (H + 2) * W), jnp.bfloat16)],
        compiler_params=pltpu.CompilerParams(dimension_semantics=("parallel",)),
    )(x_flat, w3.astype(jnp.bfloat16), scale_in, shift_in, m_dx0, m_dx2)


# ----------------------------------------------------------------------------
# Kernel 2: final BatchNorm affine + ReLU on the (N, C, H*W) layout -- every
# load/store is lane-dense (H*W is a multiple of 128 at these shapes).
# ----------------------------------------------------------------------------
def bn_relu_kernel(x_ref, scale_ref, shift_ref, o_ref):
    # x_ref/o_ref: (1, C, H*W)   scale_ref/shift_ref: (C, 1)
    o_ref[0] = jnp.maximum(x_ref[0] * scale_ref[...] + shift_ref[...], 0.0)


def bn_relu_nchw(x_flat, scale, shift):
    N, C, HW = x_flat.shape
    return pl.pallas_call(
        bn_relu_kernel,
        out_shape=jax.ShapeDtypeStruct((N, C, HW), jnp.float32),
        grid=(N,),
        in_specs=[pl.BlockSpec((1, C, HW), lambda n: (n, 0, 0)),
                  pl.BlockSpec((C, 1), lambda n: (0, 0)),
                  pl.BlockSpec((C, 1), lambda n: (0, 0))],
        out_specs=pl.BlockSpec((1, C, HW), lambda n: (n, 0, 0)),
        compiler_params=pltpu.CompilerParams(dimension_semantics=("parallel",)),
    )(x_flat, scale, shift)


# ----------------------------------------------------------------------------
# DoubleConv forward (training-mode BatchNorm: batch mean / biased variance,
# eps=1e-5, matching a freshly constructed PyTorch module in training state).
# Input/output are NCHW; (N,C,H,W) <-> (N,C,H*W) reshapes are free views.
# ----------------------------------------------------------------------------
def double_conv_forward(x_nchw, params):
    x = x_nchw.astype(jnp.float32)
    N, Cin, H, W = x.shape
    Cout = params["w2"].shape[1]
    HW = H * W
    x_flat = x.reshape(N, Cin, HW)
    cnt = float(N * HW)

    # 0/1 masks that kill the row wrap-around of the lane-shifted taps.
    cols = jnp.arange(HW, dtype=jnp.int32) % W
    m_dx0 = (cols != W - 1).astype(jnp.bfloat16).reshape(1, HW)
    m_dx2 = (cols != 0).astype(jnp.bfloat16).reshape(1, HW)

    def bn_affine(psum, psq, gamma, beta):
        mean = jnp.sum(psum, axis=0) / cnt                   # (C, 1)
        var = jnp.sum(psq, axis=0) / cnt - mean * mean
        var = jnp.maximum(var, 0.0)       # guard E[x^2]-E[x]^2 cancellation
        scale = gamma.reshape(-1, 1) / jnp.sqrt(var + EPS)
        shift = beta.reshape(-1, 1) - mean * scale
        return scale, shift

    # conv1 (+ fused BN1 partial stats)
    ones = jnp.ones((Cin, 1), jnp.float32)
    zeros = jnp.zeros((Cin, 1), jnp.float32)
    y1, s1, sq1 = conv3x3_bn_stats(x_flat, params["w1"], ones, zeros,
                                   m_dx0, m_dx2, H, W, apply_input_act=False)
    scale1, shift1 = bn_affine(s1, sq1, params["gamma1"], params["beta1"])

    # conv2 with BN1+ReLU fused into the input load (+ fused BN2 partial stats)
    y2, s2, sq2 = conv3x3_bn_stats(y1, params["w2"], scale1, shift1,
                                   m_dx0, m_dx2, H, W, apply_input_act=True)
    scale2, shift2 = bn_affine(s2, sq2, params["gamma2"], params["beta2"])

    # final BN2 + ReLU (lane-dense elementwise kernel)
    out = bn_relu_nchw(y2, scale2, shift2)
    return out.reshape(N, Cout, H, W)


def init_params(key, in_channels, out_channels):
    ks = jax.random.split(key, 6)

    # PyTorch conv weight layout is (Cout, Cin, 3, 3); the kernel consumes
    # (3, Cout, 3*Cin) with w[dy, co, dx*Cin + ci] = torch_w[co, ci, dy, dx].
    # No conv bias: it is exactly cancelled by the following training-mode BN.
    def conv_w(k, cin, cout):
        w = jax.random.normal(k, (cout, cin, 3, 3), jnp.float32)
        w = w * (1.0 / (3.0 * cin) ** 0.5)
        return jnp.transpose(w, (2, 0, 3, 1)).reshape(3, cout, 3 * cin)

    return {
        "w1": conv_w(ks[0], in_channels, out_channels),
        "gamma1": 1.0 + 0.1 * jax.random.normal(ks[1], (out_channels,), jnp.float32),
        "beta1": 0.1 * jax.random.normal(ks[2], (out_channels,), jnp.float32),
        "w2": conv_w(ks[3], out_channels, out_channels),
        "gamma2": 1.0 + 0.1 * jax.random.normal(ks[4], (out_channels,), jnp.float32),
        "beta2": 0.1 * jax.random.normal(ks[5], (out_channels,), jnp.float32),
    }


if __name__ == "__main__":
    key = jax.random.PRNGKey(0)
    kx, kp = jax.random.split(key)

    in_channels, out_channels = 4, 8
    x = jax.random.normal(kx, (2, in_channels, 16, 16), jnp.float32)  # NCHW
    params = init_params(kp, in_channels, out_channels)

    out = double_conv_forward(x, params)
    out = jax.block_until_ready(out)
    assert out.shape == (2, out_channels, 16, 16)
    assert bool(jnp.all(out >= 0.0))        # final ReLU
    assert bool(jnp.all(jnp.isfinite(out)))
    print("KERNEL_OK")
</pallas_src>

<mosaic_0001>
module attributes {stable_mosaic.version = 11 : i64} {
  func.func @conv_col_kernel(%arg0: i32, %arg1: memref<1x4x256xf32, #tpu.memory_space<vmem>>, %arg2: memref<3x8x12xbf16, #tpu.memory_space<vmem>>, %arg3: memref<4x1xf32, #tpu.memory_space<vmem>>, %arg4: memref<4x1xf32, #tpu.memory_space<vmem>>, %arg5: memref<1x256xbf16, #tpu.memory_space<vmem>>, %arg6: memref<1x256xbf16, #tpu.memory_space<vmem>>, %arg7: memref<1x8x256xf32, #tpu.memory_space<vmem>>, %arg8: memref<1x8x1xf32, #tpu.memory_space<vmem>>, %arg9: memref<1x8x1xf32, #tpu.memory_space<vmem>>, %arg10: memref<12x288xbf16, #tpu.memory_space<vmem>>) attributes {dimension_semantics = [#tpu.dimension_semantics<parallel>], iteration_bounds = array<i64: 2>, scalar_prefetch = 0 : i64, scratch_operands = 1 : i64, tpu.core_type = #tpu.core_type<tc>, window_params = [{transform_indices = @transform_0, window_bounds = array<i64: 1, 4, 256>}, {pipeline_mode = #tpu.pipeline_mode<synchronous>, transform_indices = @transform_1, window_bounds = array<i64: 3, 8, 12>}, {pipeline_mode = #tpu.pipeline_mode<synchronous>, transform_indices = @transform_2, window_bounds = array<i64: 4, 1>}, {pipeline_mode = #tpu.pipeline_mode<synchronous>, transform_indices = @transform_3, window_bounds = array<i64: 4, 1>}, {pipeline_mode = #tpu.pipeline_mode<synchronous>, transform_indices = @transform_4, window_bounds = array<i64: 1, 256>}, {pipeline_mode = #tpu.pipeline_mode<synchronous>, transform_indices = @transform_5, window_bounds = array<i64: 1, 256>}, {transform_indices = @transform_6, window_bounds = array<i64: 1, 8, 256>}, {transform_indices = @transform_7, window_bounds = array<i64: 1, 8, 1>}, {transform_indices = @transform_8, window_bounds = array<i64: 1, 8, 1>}]} {
    %c0 = arith.constant 0 : index
    %c0_0 = arith.constant 0 : index
    %c0_1 = arith.constant 0 : index
    %0 = vector.load %arg1[%c0, %c0_0, %c0_1] : memref<1x4x256xf32, #tpu.memory_space<vmem>>, vector<1x4x256xf32>
    %1 = vector.shape_cast %0 : vector<1x4x256xf32> to vector<4x256xf32>
    %2 = arith.truncf %1 : vector<4x256xf32> to vector<4x256xbf16>
    %cst = arith.constant 0.000000e+00 : bf16
    %3 = vector.broadcast %cst : bf16 to vector<12x17xbf16>
    %c0_2 = arith.constant 0 : index
    %c0_3 = arith.constant 0 : index
    %4 = vector.load %arg10[%c0_2, %c0_3] : memref<12x288xbf16, #tpu.memory_space<vmem>>, vector<12x17xbf16>
    tpu.vector_store %arg10[%c0_2, %c0_3], %3 {strides = array<i32>} : memref<12x288xbf16, #tpu.memory_space<vmem>>, vector<12x17xbf16>,
    %c0_4 = arith.constant 0 : index
    %c271 = arith.constant 271 : index
    %5 = vector.load %arg10[%c0_4, %c271] : memref<12x288xbf16, #tpu.memory_space<vmem>>, vector<12x17xbf16>
    tpu.vector_store %arg10[%c0_4, %c271], %3 {strides = array<i32>} : memref<12x288xbf16, #tpu.memory_space<vmem>>, vector<12x17xbf16>,
    %c4 = arith.constant 4 : index
    %c16 = arith.constant 16 : index
    %6 = vector.load %arg10[%c4, %c16] : memref<12x288xbf16, #tpu.memory_space<vmem>>, vector<4x256xbf16>
    tpu.vector_store %arg10[%c4, %c16], %2 {strides = array<i32>} : memref<12x288xbf16, #tpu.memory_space<vmem>>, vector<4x256xbf16>,
    %c0_5 = arith.constant 0 : index
    %c0_6 = arith.constant 0 : index
    %7 = vector.load %arg5[%c0_5, %c0_6] : memref<1x256xbf16, #tpu.memory_space<vmem>>, vector<1x256xbf16>
    %8 = vector.broadcast %7 : vector<1x256xbf16> to vector<4x256xbf16>
    %9 = arith.mulf %2, %8 : vector<4x256xbf16>
    %10 = vector.extract_strided_slice %9 {offsets = [0, 0], sizes = [4, 255], strides = [1, 1]} : vector<4x256xbf16> to vector<4x255xbf16>
    %c0_7 = arith.constant 0 : index
    %c17 = arith.constant 17 : index
    %11 = vector.load %arg10[%c0_7, %c17] : memref<12x288xbf16, #tpu.memory_space<vmem>>, vector<4x255xbf16>
    tpu.vector_store %arg10[%c0_7, %c17], %10 {strides = array<i32>} : memref<12x288xbf16, #tpu.memory_space<vmem>>, vector<4x255xbf16>,
    %c0_8 = arith.constant 0 : index
    %c0_9 = arith.constant 0 : index
    %12 = vector.load %arg6[%c0_8, %c0_9] : memref<1x256xbf16, #tpu.memory_space<vmem>>, vector<1x256xbf16>
    %13 = vector.broadcast %12 : vector<1x256xbf16> to vector<4x256xbf16>
    %14 = arith.mulf %2, %13 : vector<4x256xbf16>
    %15 = vector.extract_strided_slice %14 {offsets = [0, 1], sizes = [4, 255], strides = [1, 1]} : vector<4x256xbf16> to vector<4x255xbf16>
    %c8 = arith.constant 8 : index
    %c16_10 = arith.constant 16 : index
    %16 = vector.load %arg10[%c8, %c16_10] : memref<12x288xbf16, #tpu.memory_space<vmem>>, vector<4x255xbf16>
    tpu.vector_store %arg10[%c8, %c16_10], %15 {strides = array<i32>} : memref<12x288xbf16, #tpu.memory_space<vmem>>, vector<4x255xbf16>,
    %c0_11 = arith.constant 0 : index
    %c0_12 = arith.constant 0 : index
    %17 = vector.load %arg10[%c0_11, %c0_12] : memref<12x288xbf16, #tpu.memory_space<vmem>>, vector<12x256xbf16>
    %c0_13 = arith.constant 0 : index
    %c0_14 = arith.constant 0 : index
    %c0_15 = arith.constant 0 : index
    %18 = vector.load %arg2[%c0_13, %c0_14, %c0_15] : memref<3x8x12xbf16, #tpu.memory_space<vmem>>, vector<1x8x12xbf16>
    %19 = vector.shape_cast %18 : vector<1x8x12xbf16> to vector<8x12xbf16>
    %cst_16 = arith.constant dense<0.000000e+00> : vector<8x256xf32>
    %20 = tpu.matmul %19, %17, %cst_16 {dimension_numbers = #tpu.dot_dimension_numbers<[1], [0], [0], [1], [0, 0, 1, 1], [], []>} : vector<8x12xbf16>, vector<12x256xbf16>, vector<8x256xf32> -> vector<8x256xf32>
    %c0_17 = arith.constant 0 : index
    %c16_18 = arith.constant 16 : index
    %21 = vector.load %arg10[%c0_17, %c16_18] : memref<12x288xbf16, #tpu.memory_space<vmem>>, vector<12x256xbf16>
    %c1 = arith.constant 1 : index
    %c0_19 = arith.constant 0 : index
    %c0_20 = arith.constant 0 : index
    %22 = vector.load %arg2[%c1, %c0_19, %c0_20] : memref<3x8x12xbf16, #tpu.memory_space<vmem>>, vector<1x8x12xbf16>
    %23 = vector.shape_cast %22 : vector<1x8x12xbf16> to vector<8x12xbf16>
    %cst_21 = arith.constant dense<0.000000e+00> : vector<8x256xf32>
    %24 = tpu.matmul %23, %21, %cst_21 {dimension_numbers = #tpu.dot_dimension_numbers<[1], [0], [0], [1], [0, 0, 1, 1], [], []>} : vector<8x12xbf16>, vector<12x256xbf16>, vector<8x256xf32> -> vector<8x256xf32>
    %25 = arith.addf %20, %24 : vector<8x256xf32>
    %c0_22 = arith.constant 0 : index
    %c32 = arith.constant 32 : index
    %26 = vector.load %arg10[%c0_22, %c32] : memref<12x288xbf16, #tpu.memory_space<vmem>>, vector<12x256xbf16>
    %c2 = arith.constant 2 : index
    %c0_23 = arith.constant 0 : index
    %c0_24 = arith.constant 0 : index
    %27 = vector.load %arg2[%c2, %c0_23, %c0_24] : memref<3x8x12xbf16, #tpu.memory_space<vmem>>, vector<1x8x12xbf16>
    %28 = vector.shape_cast %27 : vector<1x8x12xbf16> to vector<8x12xbf16>
    %cst_25 = arith.constant dense<0.000000e+00> : vector<8x256xf32>
    %29 = tpu.matmul %28, %26, %cst_25 {dimension_numbers = #tpu.dot_dimension_numbers<[1], [0], [0], [1], [0, 0, 1, 1], [], []>} : vector<8x12xbf16>, vector<12x256xbf16>, vector<8x256xf32> -> vector<8x256xf32>
    %30 = arith.addf %25, %29 : vector<8x256xf32>
    %c0_26 = arith.constant 0 : index
    %c0_27 = arith.constant 0 : index
    %c0_28 = arith.constant 0 : index
    %31 = vector.load %arg7[%c0_26, %c0_27, %c0_28] : memref<1x8x256xf32, #tpu.memory_space<vmem>>, vector<1x8x256xf32>
    %32 = vector.shape_cast %31 : vector<1x8x256xf32> to vector<8x256xf32>
    %33 = vector.shape_cast %30 : vector<8x256xf32> to vector<1x8x256xf32>
    tpu.vector_store %arg7[%c0_26, %c0_27, %c0_28], %33 {strides = array<i32>} : memref<1x8x256xf32, #tpu.memory_space<vmem>>, vector<1x8x256xf32>,
    %cst_29 = arith.constant dense<0.000000e+00> : vector<8xf32>
    %34 = vector.multi_reduction <add>, %30, %cst_29 [1] : vector<8x256xf32> to vector<8xf32>
    %35 = vector.shape_cast %34 : vector<8xf32> to vector<8x1xf32>
    %c0_30 = arith.constant 0 : index
    %c0_31 = arith.constant 0 : index
    %c0_32 = arith.constant 0 : index
    %36 = vector.load %arg8[%c0_30, %c0_31, %c0_32] : memref<1x8x1xf32, #tpu.memory_space<vmem>>, vector<1x8x1xf32>
    %37 = vector.shape_cast %36 : vector<1x8x1xf32> to vector<8x1xf32>
    %38 = vector.shape_cast %35 : vector<8x1xf32> to vector<1x8x1xf32>
    tpu.vector_store %arg8[%c0_30, %c0_31, %c0_32], %38 {strides = array<i32>} : memref<1x8x1xf32, #tpu.memory_space<vmem>>, vector<1x8x1xf32>,
    %39 = arith.mulf %30, %30 : vector<8x256xf32>
    %cst_33 = arith.constant dense<0.000000e+00> : vector<8xf32>
    %40 = vector.multi_reduction <add>, %39, %cst_33 [1] : vector<8x256xf32> to vector<8xf32>
    %41 = vector.shape_cast %40 : vector<8xf32> to vector<8x1xf32>
    %c0_34 = arith.constant 0 : index
    %c0_35 = arith.constant 0 : index
    %c0_36 = arith.constant 0 : index
    %42 = vector.load %arg9[%c0_34, %c0_35, %c0_36] : memref<1x8x1xf32, #tpu.memory_space<vmem>>, vector<1x8x1xf32>
    %43 = vector.shape_cast %42 : vector<1x8x1xf32> to vector<8x1xf32>
    %44 = vector.shape_cast %41 : vector<8x1xf32> to vector<1x8x1xf32>
    tpu.vector_store %arg9[%c0_34, %c0_35, %c0_36], %44 {strides = array<i32>} : memref<1x8x1xf32, #tpu.memory_space<vmem>>, vector<1x8x1xf32>,
    return
  }
  func.func @transform_0(%arg0: i32) -> (i32, i32, i32) {
    %c0_i32 = arith.constant 0 : i32
    %c0_i32_0 = arith.constant 0 : i32
    %c0_i32_1 = arith.constant 0 : i32
    return %arg0, %c0_i32, %c0_i32_0 : i32, i32, i32
  }
  func.func @transform_1(%arg0: i32) -> (i32, i32, i32) {
    %c0_i32 = arith.constant 0 : i32
    %c0_i32_0 = arith.constant 0 : i32
    %c0_i32_1 = arith.constant 0 : i32
    %c0_i32_2 = arith.constant 0 : i32
    return %c0_i32, %c0_i32_0, %c0_i32_1 : i32, i32, i32
  }
  func.func @transform_2(%arg0: i32) -> (i32, i32) {
    %c0_i32 = arith.constant 0 : i32
    %c0_i32_0 = arith.constant 0 : i32
    %c0_i32_1 = arith.constant 0 : i32
    return %c0_i32, %c0_i32_0 : i32, i32
  }
  func.func @transform_3(%arg0: i32) -> (i32, i32) {
    %c0_i32 = arith.constant 0 : i32
    %c0_i32_0 = arith.constant 0 : i32
    %c0_i32_1 = arith.constant 0 : i32
    return %c0_i32, %c0_i32_0 : i32, i32
  }
  func.func @transform_4(%arg0: i32) -> (i32, i32) {
    %c0_i32 = arith.constant 0 : i32
    %c0_i32_0 = arith.constant 0 : i32
    %c0_i32_1 = arith.constant 0 : i32
    return %c0_i32, %c0_i32_0 : i32, i32
  }
  func.func @transform_5(%arg0: i32) -> (i32, i32) {
    %c0_i32 = arith.constant 0 : i32
    %c0_i32_0 = arith.constant 0 : i32
    %c0_i32_1 = arith.constant 0 : i32
    return %c0_i32, %c0_i32_0 : i32, i32
  }
  func.func @transform_6(%arg0: i32) -> (i32, i32, i32) {
    %c0_i32 = arith.constant 0 : i32
    %c0_i32_0 = arith.constant 0 : i32
    %c0_i32_1 = arith.constant 0 : i32
    return %arg0, %c0_i32, %c0_i32_0 : i32, i32, i32
  }
  func.func @transform_7(%arg0: i32) -> (i32, i32, i32) {
    %c0_i32 = arith.constant 0 : i32
    %c0_i32_0 = arith.constant 0 : i32
    %c0_i32_1 = arith.constant 0 : i32
    return %arg0, %c0_i32, %c0_i32_0 : i32, i32, i32
  }
  func.func @transform_8(%arg0: i32) -> (i32, i32, i32) {
    %c0_i32 = arith.constant 0 : i32
    %c0_i32_0 = arith.constant 0 : i32
    %c0_i32_1 = arith.constant 0 : i32
    return %arg0, %c0_i32, %c0_i32_0 : i32, i32, i32
  }
}

</mosaic_0001>

<llo_original>
// kernel: tpu_custom_call.1
$region0: #{tpu_custom_call.1}
  #allocation0 [shape = 'u32[]', space=smem, size = 0x4, offset = 0x4, fixed_abs, tag = 'smem constant byte address 0x4 - core index']
  #allocation1 [shape = 'u32[72,128]{1,0:T(1,128)}', space=vmem, size = 0x9000, scoped, tag = 'internal scratch']
  #allocation2 [shape = 'bf16[12,288]{1,0:T(8,128)(2,1)}', space=vmem, size = 0x3000, scoped, tag = 'scratch operand']
  %s0 = inlined_call_operand.hbm [shape: f32[2,4,256], index: 0, kind: input, shape index: {}]
  %s1 = inlined_call_operand.hbm [shape: bf16[3,8,12], index: 1, kind: input, shape index: {}]
  %s2 = inlined_call_operand.vmem [shape: f32[4,1], index: 2, kind: input, shape index: {}]
  %s3 = inlined_call_operand.vmem [shape: f32[4,1], index: 3, kind: input, shape index: {}]
  %s4 = inlined_call_operand.vmem [shape: bf16[1,256], index: 4, kind: input, shape index: {}]
  %s5 = inlined_call_operand.vmem [shape: bf16[1,256], index: 5, kind: input, shape index: {}]
  %s6 = inlined_call_operand.hbm [shape: f32[2,8,256], index: 6, kind: output, shape index: {0}]
  %s7 = inlined_call_operand.vmem [shape: f32[2,8,1], index: 7, kind: output, shape index: {1}]
  %s8 = inlined_call_operand.vmem [shape: f32[2,8,1], index: 8, kind: output, shape index: {2}]
  %9 = xla_tuple %s6, %s7, %s8
  %s10 = sld [smem:[#allocation0]]
  $region81: #{tpu_custom_call.1} parent=0
    _
  %s12 = ssub.s32 1, %s10
  %s13 = scalar_select 0, %s12, %s10
  $region1: #{tpu_custom_call.1} parent=0
    #allocation3 [shape = 'u8[8192]{0}', space=vmem, size = 0x2000, scoped, tag = 'input window, operand 0']
    #allocation4 [shape = 's32[2]{0}', space=sflag, size = 0x8, scoped, tag = 'scoped memory for tpu_custom_call.1']
    #allocation5 [shape = 's32[2]{0}', space=sflag, size = 0x8, scoped, tag = 'scoped memory for tpu_custom_call.1']
    #allocation6 [shape = 'u8[6144]{0}', space=vmem, size = 0x1800, scoped, tag = 'input window, operand 1, single buffered']
    #allocation7 [shape = 's32[1]{0}', space=sflag, size = 0x4, scoped, tag = 'scoped memory for tpu_custom_call.1']
    #allocation8 [shape = 'u8[16384]{0}', space=vmem, size = 0x4000, scoped, tag = 'output window, operand 0']
    %14 = vsyncpa [#allocation4], 0
    %s15 = scalar_lea.sflag [#allocation4], 1
    %16 = vsyncpa %s15, 0
    %17 = vsyncpa [#allocation7], 0
    %18 = vsyncpa [#allocation5], 0
    %s19 = scalar_lea.sflag [#allocation5], 1
    %20 = vsyncpa %s19, 0
    loop: start=0, step=1, limit=4
    $region2: #{tpu_custom_call.1} parent=1 // loop_pre_header
      _
    $region3: #{tpu_custom_call.1} parent=1 // loop_header
      %s22 = sphi 0, %s26
      %p23 = scmp.ge.s32.totalorder %s22, 4
      %s32 = sphi 0, %s34
      %s35 = sphi 0, %s32
      %s36 = sphi 0, %s35
      %s52 = sphi 0, %s36
      %s56 = sphi 0, %s56
      %s58 = sphi 0, %s56
      %s59 = sphi 0, %s58
      %s73 = sphi 0, %s59
      %s77 = sphi 0, %s77
      %s79 = sphi 0, %s77
      %s80 = sphi 0, %s79
      %s94 = sphi 0, %s80
      %s98 = sphi 0, %s98
      %s100 = sphi 0, %s98
      %s101 = sphi 0, %s100
      %s115 = sphi 0, %s101
      %s119 = sphi 0, %s119
      %s121 = sphi 0, %s119
      %s122 = sphi 0, %s121
      %s136 = sphi 0, %s122
      %s140 = sphi 0, %s140
      %s142 = sphi 0, %s140
      %s143 = sphi 0, %s142
      %s157 = sphi 0, %s143
      %s163 = sphi 0, %s165
      %s166 = sphi 0, %s163
      %s167 = sphi 0, %s166
      %s183 = sphi 0, %s167
      %s189 = sphi 0, %s191
      %s192 = sphi 0, %s189
      %s193 = sphi 0, %s192
      %s209 = sphi 0, %s193
      %s215 = sphi 0, %s217
      %s218 = sphi 0, %s215
      %s219 = sphi 0, %s218
      %s235 = sphi 0, %s219
    $region4: #{tpu_custom_call.1} parent=1 // loop_header_branch
      %25 = sbr.rel (%p23) target = $region8
    $region5: #{tpu_custom_call.1} parent=1 // loop_body
      %s27 = ssub.s32 %s22, 1
      %s28 = ssub.s32 %s22, 2
      %s29 = sadd.s32 %s22, 1
      %s30 = ssub.s32 %s22, %s29
      %p31 = scmp.eq.s32.totalorder %s30, 0
      %s33 = sadd.s32 %s32, 1
      %s34 = scalar_select %p31, %s32, %s33
      %p37 = pneg %p31
      %p38 = scmp.eq.s32.totalorder %s22, 1
      %p39 = por %p37, %p38
      %p40 = scmp.ne.s32.totalorder %s32, %s35
      %p41 = scmp.eq.s32.totalorder %s22, 0
      %p42 = por %p40, %p41
      %p43 = scmp.ne.s32.totalorder %s32, %s35
      %p44 = scmp.eq.s32.totalorder %s27, 1
      %p45 = por %p43, %p44
      %p46 = scmp.ne.s32.totalorder %s35, %s36
      %p47 = scmp.eq.s32.totalorder %s27, 0
      %p48 = por %p46, %p47
      %p49 = scmp.ne.s32.totalorder %s35, %s36
      %p50 = scmp.eq.s32.totalorder %s28, 1
      %p51 = por %p49, %p50
      %p53 = scmp.ne.s32.totalorder %s36, %s52
      %p54 = scmp.eq.s32.totalorder %s28, 0
      %p55 = por %p53, %p54
      %s57 = sadd.s32 %s56, 1
      %p60 = scmp.eq.s32.totalorder %s22, 1
      %p61 = scmp.ne.s32.totalorder %s56, %s58
      %p62 = scmp.eq.s32.totalorder %s22, 0
      %p63 = por %p61, %p62
      %p64 = scmp.ne.s32.totalorder %s56, %s58
      %p65 = scmp.eq.s32.totalorder %s27, 1
      %p66 = por %p64, %p65
      %p67 = scmp.ne.s32.totalorder %s58, %s59
      %p68 = scmp.eq.s32.totalorder %s27, 0
      %p69 = por %p67, %p68
      %p70 = scmp.ne.s32.totalorder %s58, %s59
      %p71 = scmp.eq.s32.totalorder %s28, 1
      %p72 = por %p70, %p71
      %p74 = scmp.ne.s32.totalorder %s59, %s73
      %p75 = scmp.eq.s32.totalorder %s28, 0
      %p76 = por %p74, %p75
      %s78 = sadd.s32 %s77, 1
      %p81 = scmp.eq.s32.totalorder %s22, 1
      %p82 = scmp.ne.s32.totalorder %s77, %s79
      %p83 = scmp.eq.s32.totalorder %s22, 0
      %p84 = por %p82, %p83
      %p85 = scmp.ne.s32.totalorder %s77, %s79
      %p86 = scmp.eq.s32.totalorder %s27, 1
      %p87 = por %p85, %p86
      %p88 = scmp.ne.s32.totalorder %s79, %s80
      %p89 = scmp.eq.s32.totalorder %s27, 0
      %p90 = por %p88, %p89
      %p91 = scmp.ne.s32.totalorder %s79, %s80
      %p92 = scmp.eq.s32.totalorder %s28, 1
      %p93 = por %p91, %p92
      %p95 = scmp.ne.s32.totalorder %s80, %s94
      %p96 = scmp.eq.s32.totalorder %s28, 0
      %p97 = por %p95, %p96
      %s99 = sadd.s32 %s98, 1
      %p102 = scmp.eq.s32.totalorder %s22, 1
      %p103 = scmp.ne.s32.totalorder %s98, %s100
      %p104 = scmp.eq.s32.totalorder %s22, 0
      %p105 = por %p103, %p104
      %p106 = scmp.ne.s32.totalorder %s98, %s100
      %p107 = scmp.eq.s32.totalorder %s27, 1
      %p108 = por %p106, %p107
      %p109 = scmp.ne.s32.totalorder %s100, %s101
      %p110 = scmp.eq.s32.totalorder %s27, 0
      %p111 = por %p109, %p110
      %p112 = scmp.ne.s32.totalorder %s100, %s101
      %p113 = scmp.eq.s32.totalorder %s28, 1
      %p114 = por %p112, %p113
      %p116 = scmp.ne.s32.totalorder %s101, %s115
      %p117 = scmp.eq.s32.totalorder %s28, 0
      %p118 = por %p116, %p117
      %s120 = sadd.s32 %s119, 1
      %p123 = scmp.eq.s32.totalorder %s22, 1
      %p124 = scmp.ne.s32.totalorder %s119, %s121
      %p125 = scmp.eq.s32.totalorder %s22, 0
      %p126 = por %p124, %p125
      %p127 = scmp.ne.s32.totalorder %s119, %s121
      %p128 = scmp.eq.s32.totalorder %s27, 1
      %p129 = por %p127, %p128
      %p130 = scmp.ne.s32.totalorder %s121, %s122
      %p131 = scmp.eq.s32.totalorder %s27, 0
      %p132 = por %p130, %p131
      %p133 = scmp.ne.s32.totalorder %s121, %s122
      %p134 = scmp.eq.s32.totalorder %s28, 1
      %p135 = por %p133, %p134
      %p137 = scmp.ne.s32.totalorder %s122, %s136
      %p138 = scmp.eq.s32.totalorder %s28, 0
      %p139 = por %p137, %p138
      %s141 = sadd.s32 %s140, 1
      %p144 = scmp.eq.s32.totalorder %s22, 1
      %p145 = scmp.ne.s32.totalorder %s140, %s142
      %p146 = scmp.eq.s32.totalorder %s22, 0
      %p147 = por %p145, %p146
      %p148 = scmp.ne.s32.totalorder %s140, %s142
      %p149 = scmp.eq.s32.totalorder %s27, 1
      %p150 = por %p148, %p149
      %p151 = scmp.ne.s32.totalorder %s142, %s143
      %p152 = scmp.eq.s32.totalorder %s27, 0
      %p153 = por %p151, %p152
      %p154 = scmp.ne.s32.totalorder %s142, %s143
      %p155 = scmp.eq.s32.totalorder %s28, 1
      %p156 = por %p154, %p155
      %p158 = scmp.ne.s32.totalorder %s143, %s157
      %p159 = scmp.eq.s32.totalorder %s28, 0
      %p160 = por %p158, %p159
      %s161 = ssub.s32 %s22, %s29
      %p162 = scmp.eq.s32.totalorder %s161, 0
      %s164 = sadd.s32 %s163, 1
      %s165 = scalar_select %p162, %s163, %s164
      %p168 = pneg %p162
      %p169 = scmp.eq.s32.totalorder %s22, 1
      %p170 = por %p168, %p169
      %p171 = scmp.ne.s32.totalorder %s163, %s166
      %p172 = scmp.eq.s32.totalorder %s22, 0
      %p173 = por %p171, %p172
      %p174 = scmp.ne.s32.totalorder %s163, %s166
      %p175 = scmp.eq.s32.totalorder %s27, 1
      %p176 = por %p174, %p175
      %p177 = scmp.ne.s32.totalorder %s166, %s167
      %p178 = scmp.eq.s32.totalorder %s27, 0
      %p179 = por %p177, %p178
      %p180 = scmp.ne.s32.totalorder %s166, %s167
      %p181 = scmp.eq.s32.totalorder %s28, 1
      %p182 = por %p180, %p181
      %p184 = scmp.ne.s32.totalorder %s167, %s183
      %p185 = scmp.eq.s32.totalorder %s28, 0
      %p186 = por %p184, %p185
      %s187 = ssub.s32 %s22, %s29
      %p188 = scmp.eq.s32.totalorder %s187, 0
      %s190 = sadd.s32 %s189, 1
      %s191 = scalar_select %p188, %s189, %s190
      %p194 = pneg %p188
      %p195 = scmp.eq.s32.totalorder %s22, 1
      %p196 = por %p194, %p195
      %p197 = scmp.ne.s32.totalorder %s189, %s192
      %p198 = scmp.eq.s32.totalorder %s22, 0
      %p199 = por %p197, %p198
      %p200 = scmp.ne.s32.totalorder %s189, %s192
      %p201 = scmp.eq.s32.totalorder %s27, 1
      %p202 = por %p200, %p201
      %p203 = scmp.ne.s32.totalorder %s192, %s193
      %p204 = scmp.eq.s32.totalorder %s27, 0
      %p205 = por %p203, %p204
      %p206 = scmp.ne.s32.totalorder %s192, %s193
      %p207 = scmp.eq.s32.totalorder %s28, 1
      %p208 = por %p206, %p207
      %p210 = scmp.ne.s32.totalorder %s193, %s209
      %p211 = scmp.eq.s32.totalorder %s28, 0
      %p212 = por %p210, %p211
      %s213 = ssub.s32 %s22, %s29
      %p214 = scmp.eq.s32.totalorder %s213, 0
      %s216 = sadd.s32 %s215, 1
      %s217 = scalar_select %p214, %s215, %s216
      %p220 = pneg %p214
      %p221 = scmp.eq.s32.totalorder %s22, 1
      %p222 = por %p220, %p221
      %p223 = scmp.ne.s32.totalorder %s215, %s218
      %p224 = scmp.eq.s32.totalorder %s22, 0
      %p225 = por %p223, %p224
      %p226 = scmp.ne.s32.totalorder %s215, %s218
      %p227 = scmp.eq.s32.totalorder %s27, 1
      %p228 = por %p226, %p227
      %p229 = scmp.ne.s32.totalorder %s218, %s219
      %p230 = scmp.eq.s32.totalorder %s27, 0
      %p231 = por %p229, %p230
      %p232 = scmp.ne.s32.totalorder %s218, %s219
      %p233 = scmp.eq.s32.totalorder %s28, 1
      %p234 = por %p232, %p233
      %p236 = scmp.ne.s32.totalorder %s219, %s235
      %p237 = scmp.eq.s32.totalorder %s28, 0
      %p238 = por %p236, %p237
      %p239 = scmp.le.s32.totalorder 1, %s22
      %p240 = scmp.lt.s32.totalorder %s22, 3
      %p241 = pnand %p239, %p240
      %p242 = pneg %p241
      // Predicated region
      $region9: #{tpu_custom_call.1} parent=5 // pred_check
        _
      $region10: #{tpu_custom_call.1} parent=5 // pred_check_branch
        %244 = sbr.rel (%p241) target = $region12
      $region11: #{tpu_custom_call.1} parent=5 // pred_region
        %s245 = ssub.s32 %s22, 1
        // Predicated region
        $region13: #{tpu_custom_call.1} parent=11 // pred_check
          %p246 = pneg %p69
        $region14: #{tpu_custom_call.1} parent=11 // pred_check_branch
          %248 = sbr.rel (%p246) target = $region16
        $region15: #{tpu_custom_call.1} parent=11 // pred_region
          %250 = vsyncadd [#allocation7], 0
          %s251 = sshll.u32 %s1, 4
          %s252 = int_to_ptr.hbm [resolvable:$true] %s251
          %s253 = sshll.u32 [#allocation6], 4
          %s254 = int_to_ptr.vmem [resolvable:$true] %s253
          %259 = dma.hbm_to_vmem [thread:$0]  %s252, 192, %s254, [#allocation7], 64, 64, 4
        $region16: #{tpu_custom_call.1} parent=11 // pred_fallthru
          _
        // Predicated region
        $region17: #{tpu_custom_call.1} parent=11 // pred_check
          %p260 = pneg %p90
        $region18: #{tpu_custom_call.1} parent=11 // pred_check_branch
          %262 = sbr.rel (%p260) target = $region20
        $region19: #{tpu_custom_call.1} parent=11 // pred_region
          _
        $region20: #{tpu_custom_call.1} parent=11 // pred_fallthru
          _
        // Predicated region
        $region21: #{tpu_custom_call.1} parent=11 // pred_check
          %p263 = pneg %p111
        $region22: #{tpu_custom_call.1} parent=11 // pred_check_branch
          %265 = sbr.rel (%p263) target = $region24
        $region23: #{tpu_custom_call.1} parent=11 // pred_region
          _
        $region24: #{tpu_custom_call.1} parent=11 // pred_fallthru
          _
        // Predicated region
        $region25: #{tpu_custom_call.1} parent=11 // pred_check
          %p266 = pneg %p132
        $region26: #{tpu_custom_call.1} parent=11 // pred_check_branch
          %268 = sbr.rel (%p266) target = $region28
        $region27: #{tpu_custom_call.1} parent=11 // pred_region
          _
        $region28: #{tpu_custom_call.1} parent=11 // pred_fallthru
          _
        // Predicated region
        $region29: #{tpu_custom_call.1} parent=11 // pred_check
          %p269 = pneg %p153
        $region30: #{tpu_custom_call.1} parent=11 // pred_check_branch
          %271 = sbr.rel (%p269) target = $region32
        $region31: #{tpu_custom_call.1} parent=11 // pred_region
          _
        $region32: #{tpu_custom_call.1} parent=11 // pred_fallthru
          _
      $region12: #{tpu_custom_call.1} parent=5 // pred_fallthru
        _
      %p272 = scmp.lt.s32.totalorder %s22, 2
      // Predicated region
      $region33: #{tpu_custom_call.1} parent=5 // pred_check
        %p273 = pneg %p272
      $region34: #{tpu_custom_call.1} parent=5 // pred_check_branch
        %275 = sbr.rel (%p273) target = $region36
      $region35: #{tpu_custom_call.1} parent=5 // pred_region
        // Predicated region
        $region37: #{tpu_custom_call.1} parent=35 // pred_check
          %p276 = pneg %p42
        $region38: #{tpu_custom_call.1} parent=35 // pred_check_branch
          %278 = sbr.rel (%p276) target = $region40
        $region39: #{tpu_custom_call.1} parent=35 // pred_region
          %s279 = sand.u32 %s32, 1
          %s280 = scalar_lea.sflag [#allocation4], %s279
          %s281 = sand.u32 %s32, 1
          %s282 = smul.addr %s281, 8
          %s283 = scalar_lea.vmem [#allocation3], %s282
          %285 = vsyncadd %s280, 0
          %s286 = smul.addr %s22, 2
          %s287 = smul.addr %s286, 4
          %s288 = scalar_lea.hbm %s0, %s287
          %s290 = sshll.u32 %s288, 4
          %s291 = int_to_ptr.hbm [resolvable:$true] %s290
          %s292 = sshll.u32 %s283, 4
          %s293 = int_to_ptr.vmem [resolvable:$true] %s292
          %295 = dma.hbm_to_vmem [thread:$0]  %s291, 128, %s293, %s280
        $region40: #{tpu_custom_call.1} parent=35 // pred_fallthru
          _
      $region36: #{tpu_custom_call.1} parent=5 // pred_fallthru
        _
      %p296 = scmp.le.s32.totalorder 1, %s22
      %p297 = scmp.lt.s32.totalorder %s22, 3
      %p298 = pnand %p296, %p297
      %p299 = pneg %p298
      // Predicated region
      $region41: #{tpu_custom_call.1} parent=5 // pred_check
        _
      $region42: #{tpu_custom_call.1} parent=5 // pred_check_branch
        %301 = sbr.rel (%p298) target = $region44
      $region43: #{tpu_custom_call.1} parent=5 // pred_region
        %s302 = ssub.s32 %s22, 1
        %s303 = sand.u32 %s35, 1
        %s304 = scalar_lea.sflag [#allocation4], %s303
        %s305 = sand.u32 %s35, 1
        %s306 = smul.addr %s305, 8
        %s307 = scalar_lea.vmem [#allocation3], %s306
        // Predicated region
        $region45: #{tpu_custom_call.1} parent=43 // pred_check
          %p308 = pneg %p48
        $region46: #{tpu_custom_call.1} parent=43 // pred_check_branch
          %310 = sbr.rel (%p308) target = $region48
        $region47: #{tpu_custom_call.1} parent=43 // pred_region
          %312 = dma.done %s304, 128
        $region48: #{tpu_custom_call.1} parent=43 // pred_fallthru
          _
        // Predicated region
        $region49: #{tpu_custom_call.1} parent=43 // pred_check
          %p313 = pneg %p69
        $region50: #{tpu_custom_call.1} parent=43 // pred_check_branch
          %315 = sbr.rel (%p313) target = $region52
        $region51: #{tpu_custom_call.1} parent=43 // pred_region
          %317 = dma.done [#allocation7], 192
        $region52: #{tpu_custom_call.1} parent=43 // pred_fallthru
          _
        %s318 = sand.u32 %s35, 1
        %s319 = scalar_lea.sflag [#allocation4], %s318
        %s320 = sand.u32 %s35, 1
        %s321 = smul.addr %s320, 8
        %s322 = scalar_lea.vmem [#allocation3], %s321
        %p323 = pneg %p48
        %p324 = pneg %p45
        %p325 = pneg %p69
        %p326 = pneg %p66
        %p327 = pneg %p90
        %p328 = pneg %p87
        %p329 = pneg %p111
        %p330 = pneg %p108
        %p331 = pneg %p132
        %p332 = pneg %p129
        %p333 = pneg %p153
        %p334 = pneg %p150
        %p335 = pneg %p179
        %p336 = pneg %p176
        %s337 = sand.u32 %s166, 1
        %s338 = scalar_lea.sflag [#allocation5], %s337
        %s339 = sand.u32 %s166, 1
        %s340 = smul.addr %s339, 16
        %s341 = scalar_lea.vmem [#allocation8], %s340
        %p342 = pneg %p205
        %p343 = pneg %p202
        %p344 = scmp.lt.s32.totalorder %s27, 1
        %s345 = scalar_select %p344, %s27, 1
        %s346 = smul.addr %s345, 8
        %s347 = scalar_lea.vmem %s7, %s346
        %p348 = pneg %p231
        %p349 = pneg %p228
        %p350 = scmp.lt.s32.totalorder %s27, 1
        %s351 = scalar_select %p350, %s27, 1
        %s352 = smul.addr %s351, 8
        %s353 = scalar_lea.vmem %s8, %s352
        %p354 = scmp.lt.s32.totalorder %s27, 1
        %s355 = scalar_select %p354, %s27, 1
        %s356 = smul.addr %s355, 8
        %s357 = scalar_lea.vmem %s7, %s356
        %p358 = scmp.lt.s32.totalorder %s27, 1
        %s359 = scalar_select %p358, %s27, 1
        %s360 = smul.addr %s359, 8
        %s361 = scalar_lea.vmem %s8, %s360
        %v363 = vld [vmem:[%s307] sm:$0xff]
        %365 = vst [vmem:[#allocation1] ss:$2 sm:$0xff] %v363
        %v366 = vld.sshfl [vmem:[#allocation1] sm:$0xff pattern:$0x75316420]
        %v367 = vld.sshfl [vmem:[#allocation1 + $0x8] sm:$0xff pattern:$0x75316420]
        %v370 = vpack.c.bf16 %v367, %v366
        %vm371 = vcmask 134144
        %372 = vst.msk [vmem:[#allocation2] sm:$0xf] %vm371, 0
        %vm373 = vcmask 132096
        %374 = vst.msk [vmem:[#allocation2 + $0xc] sm:$0x3] %vm373, 0
        %vm375 = vcmask 257144
        %376 = vst.msk [vmem:[#allocation2 + $0x8] sm:$0xf] %vm375, 0
        %vm377 = vcmask 255096
        %378 = vst.msk [vmem:[#allocation2 + $0x14] sm:$0x3] %vm377, 0
        %v380 = vrot.slane %v370, 6
        %381 = vrot.lane.b32.xlu0 %v380, 16
        %v382 = vpop.permute.xlu0 %381
        %v383 = vrot.slane %v382, 4
        %vm384 = vcmask 130048
        %v385 = vsel %vm384, %v383, %v382
        %vm388 = vcmask 1043586
        %vm389 = vcmask 1047558
        %vm390 = vmor %vm389, %vm388
        %391 = vst.msk [vmem:[#allocation2] sm:$0xcc] %vm390, %v385
        %vm392 = vcmask 125954
        %393 = vst.msk [vmem:[#allocation2 + $0x8] sm:$0xc] %vm392, %v383
        %v394 = vld [vmem:[%s4] sm:$0x3]
        %396 = vst [vmem:[#allocation1] ss:$9 sm:$0xff] %v394
        %v397 = vld [vmem:[#allocation1] sm:$0xff]
        %v398 = vld [vmem:[#allocation1 + $0x9] sm:$0xff]
        %v399 = vpack.i.b16 %v397, %v397
        %v401 = vperm.slane %v399, 0
        %v402 = vpack.i.b16 %v398, %v398
        %v404 = vperm.slane %v402, 0
        %v405 = vunpack.c.l.bf16 %v370
        %v406 = vunpack.c.h.bf16 %v370
        %v407 = vunpack.c.l.bf16 %v401
        %v408 = vunpack.c.l.bf16 %v404
        %v409 = vmul.f32 %v405, %v407
        %v410 = vmul.f32 %v406, %v408
        %v411 = vpack.c.bf16 %v410, %v409
        %413 = vrot.lane.b32.xlu0 %v411, 17
        %v414 = vpop.permute.xlu0 %413
        %v415 = vrot.slane %v414, 4
        %vm416 = vcmask 138240
        %v417 = vsel %vm416, %v415, %v414
        %vm420 = vcmask 1041544
        %vm421 = vcmask 1045508
        %vm422 = vmor %vm421, %vm420
        %423 = vst.msk [vmem:[#allocation2] sm:$0x33] %vm422, %v417
        %vm424 = vcmask 123904
        %425 = vst.msk [vmem:[#allocation2 + $0x8] sm:$0x3] %vm424, %v415
        %v426 = vld [vmem:[%s5] sm:$0x3]
        %428 = vst [vmem:[#allocation1] ss:$9 sm:$0xff] %v426
        %v429 = vld [vmem:[#allocation1] sm:$0xff]
        %v430 = vld [vmem:[#allocation1 + $0x9] sm:$0xff]
        %v431 = vpack.i.b16 %v429, %v429
        %v433 = vperm.slane %v431, 0
        %v434 = vpack.i.b16 %v430, %v430
        %v436 = vperm.slane %v434, 0
        %v437 = vunpack.c.l.bf16 %v433
        %v438 = vunpack.c.l.bf16 %v436
        %v439 = vmul.f32 %v405, %v437
        %v440 = vmul.f32 %v406, %v438
        %v441 = vpack.c.bf16 %v440, %v439
        %443 = vrot.lane.b32.xlu0 %v441, 15
        %v444 = vpop.permute.xlu0 %443
        %v445 = vrot.slane %v444, 4
        %vm446 = vcmask 121856
        %v447 = vsel %vm446, %v445, %v444
        %vm450 = vcmask 1041536
        %vm451 = vmor %vm421, %vm450
        %452 = vst.msk [vmem:[#allocation2 + $0xc] sm:$0x33] %vm451, %v447
        %vm453 = vcmask 115712
        %454 = vst.msk [vmem:[#allocation2 + $0x14] sm:$0x3] %vm453, %v445
        %v455 = vld [vmem:[#allocation2] sm:$0xff]
        %v456 = vld [vmem:[#allocation2 + $0xc] sm:$0x33]
        %v457 = vld [vmem:[#allocation6] sm:$0xf]
        %v458 = vld [vmem:[#allocation2 + $0x8] sm:$0xf]
        %v459 = vld [vmem:[#allocation2 + $0x14] sm:$0x3]
        %s460 = scalar_lea.vmem [#allocation6], 4
        %v461 = vld [vmem:[%s460] sm:$0xf]
        %v466 = vunpack.c.l.b16 %v455
        %v467 = vunpack.c.h.b16 %v455
        %v468 = vunpack.c.l.b16 %v458
        %v469 = vunpack.c.l.b16 %v456
        %v470 = vunpack.c.h.b16 %v456
        %v471 = vunpack.c.l.b16 %v459
        %v472 = vpack.c.b16 %v469, %v466
        %v473 = vpack.c.b16 %v470, %v467
        %v474 = vpack.c.b16 %v471, %v468
        %475 = vrot.lane.b32.xlu0 %v472, 112
        %v476 = vpop.permute.xlu0 %475
        %477 = vrot.lane.b32.xlu0 %v473, 112
        %v478 = vpop.permute.xlu0 %477
        %479 = vrot.lane.b32.xlu0 %v474, 112
        %v480 = vpop.permute.xlu0 %479
        %vm481 = vcmask 916480
        %v482 = vsel %vm481, %v476, %v478
        %v483 = vsel %vm481, %v478, %v480
        %vm484 = vcmask 97280
        %v486 = vsel %vm484, %v461, 0
        %vm488 = vcmask 1045504
        %v490 = vsel %vm488, %v482, 0
        %v493 = vsel %vm488, %v483, 0
        %495 = vmatpush.bf16.msra.mxu0 0
        %496 = vmatpush.bf16.msra.mxu0 0
        %497 = vmatpush.bf16.msra.mxu0 0
        %498 = vmatpush.bf16.msra.mxu0 0
        %499 = vmatpush.bf16.msra.mxu0 0
        %500 = vmatpush.bf16.msra.mxu0 0
        %501 = vmatpush.bf16.msra.mxu0 0
        %502 = vmatpush.bf16.msra.mxu0 %v490
        %503 = vmatmul.bf16.gmra.mxu0 %v486
        %v504 = vpop.f32.mrf.mxu0
        %v505 = vadd.f32 0.0, %v504
        %v506 = vpop.f32.mrf.mxu0
        %507 = vdwg.mxu0
        %508 = vmatpush.bf16.msra.mxu0 0
        %509 = vmatpush.bf16.msra.mxu0 0
        %510 = vmatpush.bf16.msra.mxu0 0
        %511 = vmatpush.bf16.msra.mxu0 0
        %512 = vmatpush.bf16.msra.mxu0 0
        %513 = vmatpush.bf16.msra.mxu0 0
        %514 = vmatpush.bf16.msra.mxu0 0
        %515 = vmatpush.bf16.msra.mxu0 %v493
        %516 = vmatmul.bf16.gmra.mxu0 %v486
        %v517 = vpop.f32.mrf.mxu0
        %v518 = vadd.f32 0.0, %v517
        %v519 = vpop.f32.mrf.mxu0
        %520 = vdwg.mxu0
        %v522 = vsel %vm484, %v457, 0
        %v525 = vsel %vm488, %v472, 0
        %v528 = vsel %vm488, %v473, 0
        %530 = vmatpush.bf16.msra.mxu0 0
        %531 = vmatpush.bf16.msra.mxu0 0
        %532 = vmatpush.bf16.msra.mxu0 0
        %533 = vmatpush.bf16.msra.mxu0 0
        %534 = vmatpush.bf16.msra.mxu0 0
        %535 = vmatpush.bf16.msra.mxu0 0
        %536 = vmatpush.bf16.msra.mxu0 0
        %537 = vmatpush.bf16.msra.mxu0 %v525
        %538 = vmatmul.bf16.gmra.mxu0 %v522
        %v539 = vpop.f32.mrf.mxu0
        %v540 = vadd.f32 %v505, %v539
        %v541 = vpop.f32.mrf.mxu0
        %542 = vdwg.mxu0
        %543 = vmatpush.bf16.msra.mxu0 0
        %544 = vmatpush.bf16.msra.mxu0 0
        %545 = vmatpush.bf16.msra.mxu0 0
        %546 = vmatpush.bf16.msra.mxu0 0
        %547 = vmatpush.bf16.msra.mxu0 0
        %548 = vmatpush.bf16.msra.mxu0 0
        %549 = vmatpush.bf16.msra.mxu0 0
        %550 = vmatpush.bf16.msra.mxu0 %v528
        %551 = vmatmul.bf16.gmra.mxu0 %v522
        %v552 = vpop.f32.mrf.mxu0
        %v553 = vadd.f32 %v518, %v552
        %v554 = vpop.f32.mrf.mxu0
        %555 = vdwg.mxu0
        %s556 = scalar_lea.vmem [#allocation6], 8
        %v557 = vld [vmem:[%s556] sm:$0xf]
        %558 = vrot.lane.b32.xlu0 %v472, 96
        %v559 = vpop.permute.xlu0 %558
        %560 = vrot.lane.b32.xlu0 %v473, 96
        %v561 = vpop.permute.xlu0 %560
        %562 = vrot.lane.b32.xlu0 %v474, 96
        %v563 = vpop.permute.xlu0 %562
        %vm564 = vcmask 785408
        %v565 = vsel %vm564, %v559, %v561
        %v566 = vsel %vm564, %v561, %v563
        %v568 = vsel %vm484, %v557, 0
        %v571 = vsel %vm488, %v565, 0
        %v574 = vsel %vm488, %v566, 0
        %576 = vmatpush.bf16.msra.mxu0 0
        %577 = vmatpush.bf16.msra.mxu0 0
        %578 = vmatpush.bf16.msra.mxu0 0
        %579 = vmatpush.bf16.msra.mxu0 0
        %580 = vmatpush.bf16.msra.mxu0 0
        %581 = vmatpush.bf16.msra.mxu0 0
        %582 = vmatpush.bf16.msra.mxu0 0
        %583 = vmatpush.bf16.msra.mxu0 %v571
        %584 = vmatmul.bf16.gmra.mxu0 %v568
        %v585 = vpop.f32.mrf.mxu0
        %v586 = vadd.f32 0.0, %v585
        %v587 = vpop.f32.mrf.mxu0
        %588 = vdwg.mxu0
        %589 = vmatpush.bf16.msra.mxu0 0
        %590 = vmatpush.bf16.msra.mxu0 0
        %591 = vmatpush.bf16.msra.mxu0 0
        %592 = vmatpush.bf16.msra.mxu0 0
        %593 = vmatpush.bf16.msra.mxu0 0
        %594 = vmatpush.bf16.msra.mxu0 0
        %595 = vmatpush.bf16.msra.mxu0 0
        %596 = vmatpush.bf16.msra.mxu0 %v574
        %597 = vmatmul.bf16.gmra.mxu0 %v568
        %v598 = vpop.f32.mrf.mxu0
        %v599 = vadd.f32 0.0, %v598
        %v600 = vpop.f32.mrf.mxu0
        %601 = vdwg.mxu0
        %v602 = vadd.f32 %v540, %v586
        %v603 = vadd.f32 %v553, %v599
        %604 = vst [vmem:[%s341] sm:$0xff] %v602
        %605 = vst [vmem:[%s341 + $0x8] sm:$0xff] %v603
        %v606 = vadd.f32 %v602, %v603
        %607 = vadd.xlane.f32.xlu0 %v606
        %v608 = vpop.xlane.xlu0 %607
        %vm609 = vcmask 7168
        %610 = vst.msk [vmem:[%s357] sm:$0xff] %vm609, %v608
        %v611 = vmul.f32 %v602, %v602
        %v612 = vmul.f32 %v603, %v603
        %v613 = vadd.f32 %v611, %v612
        %614 = vadd.xlane.f32.xlu0 %v613
        %v615 = vpop.xlane.xlu0 %614
        %616 = vst.msk [vmem:[%s361] sm:$0xff] %vm609, %v615
        %s617 = sand.u32 %s166, 1
        %s618 = scalar_lea.sflag [#allocation5], %s617
        %s619 = sand.u32 %s166, 1
        %s620 = smul.addr %s619, 16
        %s621 = scalar_lea.vmem [#allocation8], %s620
        %p622 = scmp.lt.s32.totalorder %s27, 1
        %s623 = scalar_select %p622, %s27, 1
        %s624 = smul.addr %s623, 8
        %s625 = scalar_lea.vmem %s7, %s624
        %p626 = scmp.lt.s32.totalorder %s27, 1
        %s627 = scalar_select %p626, %s27, 1
        %s628 = smul.addr %s627, 8
        %s629 = scalar_lea.vmem %s8, %s628
        // Predicated region
        $region53: #{tpu_custom_call.1} parent=43 // pred_check
          %p630 = pneg %p176
        $region54: #{tpu_custom_call.1} parent=43 // pred_check_branch
          %632 = sbr.rel (%p630) target = $region56
        $region55: #{tpu_custom_call.1} parent=43 // pred_region
          %634 = vsyncadd %s618, 0
          %s635 = smul.addr %s27, 2
          %s636 = smul.addr %s635, 8
          %s637 = scalar_lea.hbm %s6, %s636
          %s639 = sshll.u32 %s621, 4
          %s640 = int_to_ptr.vmem [resolvable:$true] %s639
          %s641 = sshll.u32 %s637, 4
          %s642 = int_to_ptr.hbm [resolvable:$true] %s641
          %644 = dma.vmem_to_hbm [thread:$0]  %s640, 256, %s642, %s618
        $region56: #{tpu_custom_call.1} parent=43 // pred_fallthru
          _
        // Predicated region
        $region57: #{tpu_custom_call.1} parent=43 // pred_check
          %p645 = pneg %p202
        $region58: #{tpu_custom_call.1} parent=43 // pred_check_branch
          %647 = sbr.rel (%p645) target = $region60
        $region59: #{tpu_custom_call.1} parent=43 // pred_region
          _
        $region60: #{tpu_custom_call.1} parent=43 // pred_fallthru
          _
        // Predicated region
        $region61: #{tpu_custom_call.1} parent=43 // pred_check
          %p648 = pneg %p228
        $region62: #{tpu_custom_call.1} parent=43 // pred_check_branch
          %650 = sbr.rel (%p648) target = $region64
        $region63: #{tpu_custom_call.1} parent=43 // pred_region
          _
        $region64: #{tpu_custom_call.1} parent=43 // pred_fallthru
          _
      $region44: #{tpu_custom_call.1} parent=5 // pred_fallthru
        _
      %p651 = scmp.le.s32.totalorder 2, %s22
      // Predicated region
      $region65: #{tpu_custom_call.1} parent=5 // pred_check
        %p652 = pneg %p651
      $region66: #{tpu_custom_call.1} parent=5 // pred_check_branch
        %654 = sbr.rel (%p652) target = $region68
      $region67: #{tpu_custom_call.1} parent=5 // pred_region
        %s655 = ssub.s32 %s22, 2
        // Predicated region
        $region69: #{tpu_custom_call.1} parent=67 // pred_check
          %p656 = pneg %p182
        $region70: #{tpu_custom_call.1} parent=67 // pred_check_branch
          %658 = sbr.rel (%p656) target = $region72
        $region71: #{tpu_custom_call.1} parent=67 // pred_region
          %s659 = sand.u32 %s167, 1
          %s660 = scalar_lea.sflag [#allocation5], %s659
          %s661 = sand.u32 %s167, 1
          %s662 = smul.addr %s661, 16
          %s663 = scalar_lea.vmem [#allocation8], %s662
          %665 = dma.done %s660, 256
        $region72: #{tpu_custom_call.1} parent=67 // pred_fallthru
          _
        // Predicated region
        $region73: #{tpu_custom_call.1} parent=67 // pred_check
          %p666 = pneg %p208
        $region74: #{tpu_custom_call.1} parent=67 // pred_check_branch
          %668 = sbr.rel (%p666) target = $region76
        $region75: #{tpu_custom_call.1} parent=67 // pred_region
          %p669 = scmp.lt.s32.totalorder %s28, 1
          %s670 = scalar_select %p669, %s28, 1
          %s671 = smul.addr %s670, 8
          %s672 = scalar_lea.vmem %s7, %s671
        $region76: #{tpu_custom_call.1} parent=67 // pred_fallthru
          _
        // Predicated region
        $region77: #{tpu_custom_call.1} parent=67 // pred_check
          %p673 = pneg %p234
        $region78: #{tpu_custom_call.1} parent=67 // pred_check_branch
          %675 = sbr.rel (%p673) target = $region80
        $region79: #{tpu_custom_call.1} parent=67 // pred_region
          %p676 = scmp.lt.s32.totalorder %s28, 1
          %s677 = scalar_select %p676, %s28, 1
          %s678 = smul.addr %s677, 8
          %s679 = scalar_lea.vmem %s8, %s678
        $region80: #{tpu_custom_call.1} parent=67 // pred_fallthru
          _
      $region68: #{tpu_custom_call.1} parent=5 // pred_fallthru
        _
    $region6: #{tpu_custom_call.1} parent=1 // loop_footer
      %s26 = sadd.s32 1, %s22
    $region7: #{tpu_custom_call.1} parent=1 // loop_footer_branch
      %21 = sbr.rel target = $region3
    $region8: #{tpu_custom_call.1} parent=1 // loop_exit
      _
    %680 = vsyncpa [#allocation4], 1
    %s681 = scalar_lea.sflag [#allocation4], 1
    %682 = vsyncpa %s681, 1
    %683 = vsyncpa [#allocation7], 1
    %684 = vsyncpa [#allocation5], 1
    %s685 = scalar_lea.sflag [#allocation5], 1
    %686 = vsyncpa %s685, 1

</llo_original>
